<compile_context>
chip_gen: v5e
topology: v5e:2x2
jax: 0.10.0
libtpu: 0.0.40
codegen_flags: <defaults>
</compile_context>

<pallas_src>
import jax
import jax.numpy as jnp
from jax.experimental import pallas as pl
from jax.experimental.pallas import tpu as pltpu


def grn_kernel(x_ref, gb_ref, o_ref):
    """One (TM, HW) row tile; each row is one (n, c) pair.

    gb_ref is (TM, 2) float32: column 0 = gamma, column 1 = beta.
    """
    x32 = x_ref[...].astype(jnp.float32)                        # (TM, HW)
    # Gx = ||x||_2 over spatial dims -> one scalar per (n, c) row.
    gx = jnp.sqrt(jnp.sum(x32 * x32, axis=-1, keepdims=True))   # (TM, 1)
    # PyTorch: Nx = Gx / (Gx.mean(dim=-1, keepdim=True) + 1e-6); the mean is
    # over a size-1 axis, so it equals Gx itself.
    nx = gx / (gx + 1e-6)                                       # (TM, 1)

    gb = gb_ref[...]                                            # (TM, 2) f32
    gamma = gb[:, 0:1]
    beta = gb[:, 1:2]

    # Fused epilogue: gamma*(x*nx) + beta + x == x*(gamma*nx + 1) + beta.
    # Re-read x_ref so the f32 up-cast above need not stay live until here.
    scale = gamma * nx + 1.0                                    # (TM, 1)
    out = x_ref[...].astype(jnp.float32) * scale + beta
    o_ref[...] = out.astype(o_ref.dtype)


def grn_forward(x, gamma, beta, *, max_tile_bytes=4 * 1024 * 1024):
    """x: (N, C, H, W); gamma, beta: (1, C, 1, 1). Returns (N, C, H, W)."""
    N, C, H, W = x.shape
    R, HW = N * C, H * W

    x2 = x.reshape(R, HW)
    # One merged (R, 2) float32 side input: col 0 = gamma, col 1 = beta.
    # Kept in f32 (negligible bandwidth; no quantization for bf16 activations).
    gb = jnp.concatenate(
        [
            jnp.broadcast_to(gamma.reshape(1, C, 1), (N, C, 1)).reshape(R, 1),
            jnp.broadcast_to(beta.reshape(1, C, 1), (N, C, 1)).reshape(R, 1),
        ],
        axis=-1,
    ).astype(jnp.float32)

    bytes_per_elem = jnp.dtype(x.dtype).itemsize
    # Rows per tile so one (TM, HW) tile <= max_tile_bytes. Pallas
    # double-buffers input and output tiles (~4 * tile) plus transient f32
    # temps; vmem_limit_bytes below leaves headroom on every generation
    # (including v7x's 64 MiB per-TensorCore VMEM).
    tm = max(8, max_tile_bytes // (HW * bytes_per_elem))
    tm = (tm // 8) * 8
    # Keep enough grid steps for DMA pipelining and for v7x's two TensorCores
    # (row axis is "parallel") whenever the row count allows it.
    min_steps = 8
    if R >= min_steps * 8:
        tm = min(tm, ((pl.cdiv(R, min_steps) + 7) // 8) * 8)
    if tm >= R:
        tm = R  # single full-extent row block (valid even if R % 8 != 0)
    grid = (pl.cdiv(R, tm),)  # ragged last block: OOB stores are masked

    cost = pl.CostEstimate(
        flops=6 * R * HW,
        transcendentals=2 * R,
        bytes_accessed=2 * R * HW * bytes_per_elem + R * 2 * 4,
    )

    out = pl.pallas_call(
        grn_kernel,
        out_shape=jax.ShapeDtypeStruct((R, HW), x.dtype),
        grid=grid,
        in_specs=[
            pl.BlockSpec((tm, HW), lambda i: (i, 0)),
            pl.BlockSpec((tm, 2), lambda i: (i, 0)),
        ],
        out_specs=pl.BlockSpec((tm, HW), lambda i: (i, 0)),
        compiler_params=pltpu.CompilerParams(
            dimension_semantics=("parallel",),
            vmem_limit_bytes=48 * 1024 * 1024,
        ),
        cost_estimate=cost,
    )(x2, gb)

    return out.reshape(N, C, H, W)


def grn_reference(x, gamma, beta):
    # Pure-JAX reference mirroring the PyTorch forward exactly.
    gx = jnp.sqrt(jnp.sum(x * x, axis=(-2, -1), keepdims=True))    # (N,C,1,1)
    nx = gx / (jnp.mean(gx, axis=-1, keepdims=True) + 1e-6)
    return gamma * (x * nx) + beta + x


if __name__ == "__main__":
    root = jax.random.PRNGKey(0)

    def run_case(case_idx, n, c, h, w):
        kx, kg, kb = jax.random.split(jax.random.fold_in(root, case_idx), 3)
        x = jax.random.uniform(kx, (n, c, h, w), dtype=jnp.float32)
        # Module __init__ uses torch.zeros for gamma/beta; use deterministic
        # nonzero values so the affine path is actually exercised.
        gamma = 0.1 * jax.random.normal(kg, (1, c, 1, 1), dtype=jnp.float32)
        beta = 0.1 * jax.random.normal(kb, (1, c, 1, 1), dtype=jnp.float32)

        out = jax.block_until_ready(grn_forward(x, gamma, beta))
        ref = grn_reference(x, gamma, beta)

        assert out.shape == x.shape and out.dtype == x.dtype
        assert jnp.allclose(out, ref, atol=1e-5, rtol=1e-5), (
            f"mismatch vs reference in case {case_idx}"
        )

    # Spec shape from the PyTorch module: (2, dim=3, 32, 32) -> single block.
    run_case(0, 2, 3, 32, 32)
    # Multi-step row grid (R=128 rows -> tm=16, 8 grid steps).
    run_case(1, 8, 16, 32, 32)
    # Ragged last block (R=134 rows, tm=24 -> cdiv grid with masked tail).
    run_case(2, 2, 67, 16, 16)

    print("KERNEL_OK")
</pallas_src>

<mosaic_0001>
module attributes {stable_mosaic.version = 11 : i64} {
  func.func @grn_kernel(%arg0: i32, %arg1: memref<6x1024xf32, #tpu.memory_space<vmem>>, %arg2: memref<6x2xf32, #tpu.memory_space<vmem>>, %arg3: memref<6x1024xf32, #tpu.memory_space<vmem>>) attributes {dimension_semantics = [#tpu.dimension_semantics<parallel>], iteration_bounds = array<i64: 1>, scalar_prefetch = 0 : i64, scratch_operands = 0 : i64, tpu.core_type = #tpu.core_type<tc>, window_params = [{transform_indices = @transform_0, window_bounds = array<i64: 6, 1024>}, {transform_indices = @transform_1, window_bounds = array<i64: 6, 2>}, {transform_indices = @transform_2, window_bounds = array<i64: 6, 1024>}]} {
    %c0 = arith.constant 0 : index
    %c0_0 = arith.constant 0 : index
    %0 = vector.load %arg1[%c0, %c0_0] : memref<6x1024xf32, #tpu.memory_space<vmem>>, vector<6x1024xf32>
    %1 = arith.mulf %0, %0 : vector<6x1024xf32>
    %cst = arith.constant dense<0.000000e+00> : vector<6xf32>
    %2 = vector.multi_reduction <add>, %1, %cst [1] : vector<6x1024xf32> to vector<6xf32>
    %3 = vector.shape_cast %2 : vector<6xf32> to vector<6x1xf32>
    %4 = math.sqrt %3 : vector<6x1xf32>
    %cst_1 = arith.constant 9.99999997E-7 : f32
    %5 = vector.broadcast %cst_1 : f32 to vector<6x1xf32>
    %6 = arith.addf %4, %5 : vector<6x1xf32>
    %7 = arith.divf %4, %6 : vector<6x1xf32>
    %c0_2 = arith.constant 0 : index
    %c0_3 = arith.constant 0 : index
    %8 = vector.load %arg2[%c0_2, %c0_3] : memref<6x2xf32, #tpu.memory_space<vmem>>, vector<6x2xf32>
    %9 = vector.extract_strided_slice %8 {offsets = [0, 0], sizes = [6, 1], strides = [1, 1]} : vector<6x2xf32> to vector<6x1xf32>
    %10 = vector.extract_strided_slice %8 {offsets = [0, 1], sizes = [6, 1], strides = [1, 1]} : vector<6x2xf32> to vector<6x1xf32>
    %11 = arith.mulf %9, %7 : vector<6x1xf32>
    %cst_4 = arith.constant 1.000000e+00 : f32
    %12 = vector.broadcast %cst_4 : f32 to vector<6x1xf32>
    %13 = arith.addf %11, %12 : vector<6x1xf32>
    %c0_5 = arith.constant 0 : index
    %c0_6 = arith.constant 0 : index
    %14 = vector.load %arg1[%c0_5, %c0_6] : memref<6x1024xf32, #tpu.memory_space<vmem>>, vector<6x1024xf32>
    %15 = vector.broadcast %13 : vector<6x1xf32> to vector<6x1024xf32>
    %16 = arith.mulf %14, %15 : vector<6x1024xf32>
    %17 = vector.broadcast %10 : vector<6x1xf32> to vector<6x1024xf32>
    %18 = arith.addf %16, %17 : vector<6x1024xf32>
    %c0_7 = arith.constant 0 : index
    %c0_8 = arith.constant 0 : index
    %19 = vector.load %arg3[%c0_7, %c0_8] : memref<6x1024xf32, #tpu.memory_space<vmem>>, vector<6x1024xf32>
    tpu.vector_store %arg3[%c0_7, %c0_8], %18 {strides = array<i32>} : memref<6x1024xf32, #tpu.memory_space<vmem>>, vector<6x1024xf32>,
    return
  }
  func.func @transform_0(%arg0: i32) -> (i32, i32) {
    %c0_i32 = arith.constant 0 : i32
    %c0_i32_0 = arith.constant 0 : i32
    return %arg0, %c0_i32 : i32, i32
  }
  func.func @transform_1(%arg0: i32) -> (i32, i32) {
    %c0_i32 = arith.constant 0 : i32
    %c0_i32_0 = arith.constant 0 : i32
    return %arg0, %c0_i32 : i32, i32
  }
  func.func @transform_2(%arg0: i32) -> (i32, i32) {
    %c0_i32 = arith.constant 0 : i32
    %c0_i32_0 = arith.constant 0 : i32
    return %arg0, %c0_i32 : i32, i32
  }
}

</mosaic_0001>

<llo_original>
// kernel: tpu_custom_call.1
$region0: #{tpu_custom_call.1}
  #allocation0 [shape = 'u32[]', space=smem, size = 0x4, offset = 0x4, fixed_abs, tag = 'smem constant byte address 0x4 - core index']
  #allocation1 [shape = 'u32[72,128]{1,0:T(1,128)}', space=vmem, size = 0x9000, scoped, tag = 'internal scratch']
  %s0 = inlined_call_operand.hbm [shape: f32[6,1024], index: 0, kind: input, shape index: {}]
  %s1 = inlined_call_operand.vmem [shape: f32[6,2], index: 1, kind: input, shape index: {}]
  %s2 = inlined_call_operand.hbm [shape: f32[6,1024], index: 2, kind: output, shape index: {}]
  %s3 = sld [smem:[#allocation0]]
  $region22: #{tpu_custom_call.1} parent=0
    _
  %s5 = ssub.s32 1, %s3
  %s6 = scalar_select 0, %s5, %s3
  $region1: #{tpu_custom_call.1} parent=0
    #allocation2 [shape = 'u8[32768]{0}', space=vmem, size = 0x8000, scoped, tag = 'input window, operand 0, single buffered']
    #allocation3 [shape = 's32[1]{0}', space=sflag, size = 0x4, scoped, tag = 'scoped memory for tpu_custom_call.1']
    #allocation4 [shape = 's32[1]{0}', space=sflag, size = 0x4, scoped, tag = 'scoped memory for tpu_custom_call.1']
    #allocation5 [shape = 'u8[32768]{0}', space=vmem, size = 0x8000, scoped, tag = 'output window, operand 0, single buffered']
    %7 = vsyncpa [#allocation3], 0
    %8 = vsyncpa [#allocation4], 0
    // Predicated region
    $region2: #{tpu_custom_call.1} parent=1 // pred_check
      _
    $region3: #{tpu_custom_call.1} parent=1 // pred_check_branch
      %10 = sbr.rel (0) target = $region5
    $region4: #{tpu_custom_call.1} parent=1 // pred_region
      %12 = vsyncadd [#allocation3], 0
      %s14 = sshll.u32 %s0, 4
      %s15 = int_to_ptr.hbm [resolvable:$true] %s14
      %s16 = sshll.u32 [#allocation2], 4
      %s17 = int_to_ptr.vmem [resolvable:$true] %s16
      %19 = dma.hbm_to_vmem [thread:$0]  %s15, 1024, %s17, [#allocation3]
    $region5: #{tpu_custom_call.1} parent=1 // pred_fallthru
      _
    // Predicated region
    $region6: #{tpu_custom_call.1} parent=1 // pred_check
      _
    $region7: #{tpu_custom_call.1} parent=1 // pred_check_branch
      %21 = sbr.rel (0) target = $region9
    $region8: #{tpu_custom_call.1} parent=1 // pred_region
      _
    $region9: #{tpu_custom_call.1} parent=1 // pred_fallthru
      _
    // Predicated region
    $region10: #{tpu_custom_call.1} parent=1 // pred_check
      _
    $region11: #{tpu_custom_call.1} parent=1 // pred_check_branch
      %23 = sbr.rel (0) target = $region13
    $region12: #{tpu_custom_call.1} parent=1 // pred_region
      %25 = dma.done [#allocation3], 1024
    $region13: #{tpu_custom_call.1} parent=1 // pred_fallthru
      _
    %v26 = vld [vmem:[#allocation2] sm:$0x3f]
    %v27 = vld [vmem:[#allocation2 + $0x8] sm:$0x3f]
    %v28 = vld [vmem:[#allocation2 + $0x10] sm:$0x3f]
    %v29 = vld [vmem:[#allocation2 + $0x18] sm:$0x3f]
    %v30 = vld [vmem:[#allocation2 + $0x20] sm:$0x3f]
    %v31 = vld [vmem:[#allocation2 + $0x28] sm:$0x3f]
    %v32 = vld [vmem:[#allocation2 + $0x30] sm:$0x3f]
    %v33 = vld [vmem:[#allocation2 + $0x38] sm:$0x3f]
    %v34 = vmul.f32 %v26, %v26
    %v35 = vmul.f32 %v27, %v27
    %v36 = vmul.f32 %v28, %v28
    %v37 = vmul.f32 %v29, %v29
    %v38 = vmul.f32 %v30, %v30
    %v39 = vmul.f32 %v31, %v31
    %v40 = vmul.f32 %v32, %v32
    %v41 = vmul.f32 %v33, %v33
    %vm42 = vcmask 1045504
    %v43 = vsel %vm42, %v34, 0.0
    %v44 = vsel %vm42, %v35, 0.0
    %v45 = vadd.f32 %v43, %v44
    %v46 = vsel %vm42, %v36, 0.0
    %v47 = vadd.f32 %v45, %v46
    %v48 = vsel %vm42, %v37, 0.0
    %v49 = vadd.f32 %v47, %v48
    %v50 = vsel %vm42, %v38, 0.0
    %v51 = vadd.f32 %v49, %v50
    %v52 = vsel %vm42, %v39, 0.0
    %v53 = vadd.f32 %v51, %v52
    %v54 = vsel %vm42, %v40, 0.0
    %v55 = vadd.f32 %v53, %v54
    %v56 = vsel %vm42, %v41, 0.0
    %v57 = vadd.f32 %v55, %v56
    %58 = vadd.xlane.f32.xlu0 %v57
    %v59 = vpop.xlane.xlu0 %58
    %v60 = vrsqrt.pop %v59
    %v61 = vmul.f32 %v60, %v59
    %v62 = vmul.f32 %v61, %v60
    %v63 = vmul.f32 0.5, %v62
    %v64 = vsub.f32 1.5, %v63
    %v65 = vmul.f32 %v60, %v64
    %v66 = vmul.f32 %v59, %v65
    %vm67 = vcmp.eq.f32.partialorder %v59, inf
    %v68 = vsel %vm67, %v59, %v66
    %vm69 = vcmp.eq.f32.partialorder %v59, 0.0
    %v70 = vand.u32 %v59, 2147483648
    %v71 = vsel %vm69, %v70, %v68
    %v72 = vadd.f32 %v71, 1e-06
    %v73 = vrcp.pop %v72
    %v74 = vmul.f32 %v72, %v73
    %v75 = vsub.f32 1.0, %v74
    %v76 = vmul.f32 %v73, %v75
    %v77 = vadd.f32 %v73, %v76
    %vm78 = vweird.f32 %v72
    %vm79 = vweird.f32 %v73
    %vm80 = vmor %vm78, %vm79
    %v81 = vsel %vm80, %v73, %v77
    %v82 = vand.u32 2147483647, %v72
    %vm83 = vcmp.eq.f32.partialorder %v82, 8.507059e+37
    %v84 = vand.u32 %v72, 2147483648
    %v85 = vor.u32 1.1754944e-38, %v84
    %v86 = vsel %vm83, %v85, %v81
    %v87 = vmul.f32 %v71, %v86
    %v88 = vld [vmem:[%s1] sm:$0x3f]
    %v89 = vmul.f32 %v88, %v87
    %v90 = vadd.f32 %v89, 1.0
    %92 = vset.pattern.permute.xlu0 0
    %93 = vperm.xlu0 %92, %v90
    %v94 = vpop.permute.xlu0 %93
    %v96 = vmul.f32 %v26, %v94
    %v97 = vmul.f32 %v27, %v94
    %v98 = vmul.f32 %v28, %v94
    %v99 = vmul.f32 %v29, %v94
    %v100 = vmul.f32 %v30, %v94
    %v101 = vmul.f32 %v31, %v94
    %v102 = vmul.f32 %v32, %v94
    %v103 = vmul.f32 %v33, %v94
    %105 = vset.pattern.permute.xlu0 1
    %106 = vperm.xlu0 %105, %v88
    %v107 = vpop.permute.xlu0 %106
    %v109 = vadd.f32 %v96, %v107
    %v110 = vadd.f32 %v97, %v107
    %v111 = vadd.f32 %v98, %v107
    %v112 = vadd.f32 %v99, %v107
    %v113 = vadd.f32 %v100, %v107
    %v114 = vadd.f32 %v101, %v107
    %v115 = vadd.f32 %v102, %v107
    %v116 = vadd.f32 %v103, %v107
    %117 = vst [vmem:[#allocation5] sm:$0x3f] %v109
    %118 = vst [vmem:[#allocation5 + $0x8] sm:$0x3f] %v110
    %119 = vst [vmem:[#allocation5 + $0x10] sm:$0x3f] %v111
    %120 = vst [vmem:[#allocation5 + $0x18] sm:$0x3f] %v112
    %121 = vst [vmem:[#allocation5 + $0x20] sm:$0x3f] %v113
    %122 = vst [vmem:[#allocation5 + $0x28] sm:$0x3f] %v114
    %123 = vst [vmem:[#allocation5 + $0x30] sm:$0x3f] %v115
    %124 = vst [vmem:[#allocation5 + $0x38] sm:$0x3f] %v116
    // Predicated region
    $region14: #{tpu_custom_call.1} parent=1 // pred_check
      _
    $region15: #{tpu_custom_call.1} parent=1 // pred_check_branch
      %126 = sbr.rel (0) target = $region17
    $region16: #{tpu_custom_call.1} parent=1 // pred_region
      %128 = vsyncadd [#allocation4], 0
      %s130 = sshll.u32 [#allocation5], 4
      %s131 = int_to_ptr.vmem [resolvable:$true] %s130
      %s132 = sshll.u32 %s2, 4
      %s133 = int_to_ptr.hbm [resolvable:$true] %s132
      %135 = dma.vmem_to_hbm [thread:$0]  %s131, 1024, %s133, [#allocation4]
    $region17: #{tpu_custom_call.1} parent=1 // pred_fallthru
      _
    // Predicated region
    $region18: #{tpu_custom_call.1} parent=1 // pred_check
      _
    $region19: #{tpu_custom_call.1} parent=1 // pred_check_branch
      %137 = sbr.rel (0) target = $region21
    $region20: #{tpu_custom_call.1} parent=1 // pred_region
      %139 = dma.done [#allocation4], 1024
    $region21: #{tpu_custom_call.1} parent=1 // pred_fallthru
      _
    %140 = vsyncpa [#allocation3], 1
    %141 = vsyncpa [#allocation4], 1

</llo_original>
